<compile_context>
chip_gen: v5e
topology: v5e:2x2
jax: 0.10.0
libtpu: 0.0.40
codegen_flags: <defaults>
</compile_context>

<pallas_src>
from functools import partial

import jax
import jax.numpy as jnp
from jax.experimental import pallas as pl
from jax.experimental.pallas import tpu as pltpu


def _time_attention_kernel(xT_ref, w_in_ref, b_in_ref, w_out_ref, b_out_ref, o_ref,
                           *, n_heads):
    E, N = xT_ref.shape
    H = n_heads
    hd = E // H

    # Fused QKV projection, transposed orientation: (3E, E) @ (E, N) -> (3E, N).
    # w_in_ref is bf16 with the 1/sqrt(head_dim) query scaling folded into its q rows.
    xT = xT_ref[...].astype(jnp.bfloat16)
    qkvT = jnp.dot(w_in_ref[...], xT, preferred_element_type=jnp.float32) + b_in_ref[...]

    # Heads come off the sublane/major axis: (3E, N) -> (3H, hd, N) keeps the lane dim (N)
    # untouched, so no cross-lane data movement.  Leading-dim slices split q/k/v.
    r = qkvT.reshape(3 * H, hd, N)
    qT = r[:H]                     # (H, hd, N), already scaled by 1/sqrt(hd)
    kT = r[H:2 * H]                # (H, hd, N)
    vT = r[2 * H:]                 # (H, hd, N)

    # Single minor-dim swap so the score matmul is a canonical batched matmul.
    q = jnp.swapaxes(qT, 1, 2)     # (H, N, hd)

    # Scores for all heads in one batched MXU op: (H, N, hd) @ (H, hd, N) -> (H, N, N).
    s = jnp.einsum('hqd,hdk->hqk',
                   q.astype(jnp.bfloat16), kT.astype(jnp.bfloat16),
                   preferred_element_type=jnp.float32)

    # Numerically stable softmax in f32; EUP reciprocal instead of a VPU divide.
    s = s - jnp.max(s, axis=-1, keepdims=True)
    p = jnp.exp(s)
    p = p * pl.reciprocal(jnp.sum(p, axis=-1, keepdims=True), approx=True)

    # Context produced directly in transposed per-head form:
    # (H, hd, Nk) x (H, Nq, Nk) -> (H, hd, Nq), contracting on the last dim of both operands.
    ctxT = jnp.einsum('hdk,hqk->hdq',
                      vT.astype(jnp.bfloat16), p.astype(jnp.bfloat16),
                      preferred_element_type=jnp.float32)

    # (H, hd, N) -> (E, N) is a free leading-dim merge; one 2D XLU transpose back to (N, E).
    ctx = ctxT.reshape(E, N).T

    # Output projection (w_out_ref is W_out^T, bf16, prepared on the host).
    out = jnp.dot(ctx.astype(jnp.bfloat16), w_out_ref[...],
                  preferred_element_type=jnp.float32) + b_out_ref[...]
    o_ref[...] = out.astype(o_ref.dtype)


def prepare_time_attention_params(in_proj_weight, in_proj_bias,
                                  out_proj_weight, out_proj_bias, *, n_heads):
    """Host-side prep, call ONCE per set of weights (hoisted out of the per-call path):
       * fold 1/sqrt(head_dim) into the q rows of in_proj_weight / in_proj_bias,
       * keep W_in in (3E, E) orientation (kernel computes W_in @ x^T directly),
       * pre-transpose W_out, and cast both matmul weights to bf16 (MXU-native)."""
    threeE, E = in_proj_weight.shape
    hd = E // n_heads
    scale = 1.0 / float(hd) ** 0.5
    row_scale = jnp.concatenate([
        jnp.full((E,), scale, dtype=jnp.float32),
        jnp.ones((2 * E,), dtype=jnp.float32)])
    w_in = (in_proj_weight.astype(jnp.float32) * row_scale[:, None]).astype(jnp.bfloat16)
    b_in = (in_proj_bias.astype(jnp.float32) * row_scale).reshape(threeE, 1)   # f32
    w_out_t = out_proj_weight.T.astype(jnp.bfloat16)                           # (E, E)
    b_out = out_proj_bias.astype(jnp.float32).reshape(1, E)                    # f32
    return w_in, b_in, w_out_t, b_out


def time_attention(x, params, *, n_heads=4):
    """Self-attention forward matching TimeAttention.forward(x) (PyTorch MHA, batch_first)."""
    B, N, E = x.shape
    assert E % n_heads == 0
    hd = E // n_heads
    w_in, b_in, w_out_t, b_out = params

    # Host-side transpose so heads land on the sublane axis inside the kernel.
    xT = jnp.transpose(x, (0, 2, 1))                       # (B, E, N)

    flops = (2 * B * (3 * E) * E * N                       # QKV projection
             + 2 * B * n_heads * N * N * hd * 2            # scores + context
             + 2 * B * N * E * E)                          # output projection
    bytes_accessed = int(xT.size * 4 + w_in.size * 2 + b_in.size * 4
                         + w_out_t.size * 2 + b_out.size * 4 + B * N * E * 4)
    cost = pl.CostEstimate(flops=int(flops),
                           transcendentals=int(B * n_heads * N * N),
                           bytes_accessed=bytes_accessed)

    kernel = partial(_time_attention_kernel, n_heads=n_heads)
    out = pl.pallas_call(
        kernel,
        out_shape=jax.ShapeDtypeStruct((B, N, E), x.dtype),
        grid=(B,),
        in_specs=[
            pl.BlockSpec((None, E, N), lambda b: (b, 0, 0)),   # x^T, one batch per step
            pl.BlockSpec((3 * E, E), lambda b: (0, 0)),        # W_in (q pre-scaled, bf16)
            pl.BlockSpec((3 * E, 1), lambda b: (0, 0)),        # b_in (f32)
            pl.BlockSpec((E, E), lambda b: (0, 0)),            # W_out^T (bf16)
            pl.BlockSpec((1, E), lambda b: (0, 0)),            # b_out (f32)
        ],
        out_specs=pl.BlockSpec((None, N, E), lambda b: (b, 0, 0)),
        compiler_params=pltpu.CompilerParams(
            dimension_semantics=("parallel",)),                # v7x: shard batches over both TCs
        cost_estimate=cost,
    )(xT, w_in, b_in, w_out_t, b_out)
    return out


def _reference(x, in_proj_weight, in_proj_bias, out_proj_weight, out_proj_bias, n_heads):
    """Pure-JAX f32 reference for nn.MultiheadAttention self-attention forward."""
    B, N, E = x.shape
    hd = E // n_heads
    qkv = x @ in_proj_weight.T + in_proj_bias
    q, k, v = qkv[..., :E], qkv[..., E:2 * E], qkv[..., 2 * E:]
    q = q.reshape(B, N, n_heads, hd).transpose(0, 2, 1, 3)
    k = k.reshape(B, N, n_heads, hd).transpose(0, 2, 1, 3)
    v = v.reshape(B, N, n_heads, hd).transpose(0, 2, 1, 3)
    s = (q @ jnp.swapaxes(k, -1, -2)) / jnp.sqrt(jnp.array(hd, x.dtype))
    p = jax.nn.softmax(s, axis=-1)
    ctx = (p @ v).transpose(0, 2, 1, 3).reshape(B, N, E)
    return ctx @ out_proj_weight.T + out_proj_bias


if __name__ == "__main__":
    # Small shapes implied by the module: (B, N, embed_size) with n_heads heads.
    B, N, E, H = 2, 8, 32, 4

    key = jax.random.PRNGKey(0)
    k_x, k_win, k_bin, k_wout, k_bout = jax.random.split(key, 5)

    x = jax.random.normal(k_x, (B, N, E), dtype=jnp.float32)

    # Deterministic synthetic parameters (xavier-ish weights, small non-zero biases).
    bound_in = (6.0 / (E + 3 * E)) ** 0.5
    in_proj_weight = jax.random.uniform(k_win, (3 * E, E), minval=-bound_in,
                                        maxval=bound_in, dtype=jnp.float32)
    in_proj_bias = 0.05 * jax.random.normal(k_bin, (3 * E,), dtype=jnp.float32)

    bound_out = (1.0 / E) ** 0.5
    out_proj_weight = jax.random.uniform(k_wout, (E, E), minval=-bound_out,
                                         maxval=bound_out, dtype=jnp.float32)
    out_proj_bias = 0.05 * jax.random.normal(k_bout, (E,), dtype=jnp.float32)

    # Host-side prep done once (weights are static across calls).
    params = prepare_time_attention_params(in_proj_weight, in_proj_bias,
                                           out_proj_weight, out_proj_bias, n_heads=H)

    out = time_attention(x, params, n_heads=H)
    out = jax.block_until_ready(out)
    assert out.shape == (B, N, E)

    ref = _reference(x, in_proj_weight, in_proj_bias, out_proj_weight, out_proj_bias, H)
    err = float(jnp.max(jnp.abs(out - ref)))
    assert err < 2e-2, f"max abs error vs reference: {err}"

    print("KERNEL_OK")
</pallas_src>

<mosaic_0001>
module attributes {stable_mosaic.version = 11 : i64} {
  func.func @_time_attention_kernel(%arg0: i32, %arg1: memref<1x32x8xf32, #tpu.memory_space<vmem>>, %arg2: memref<96x32xbf16, #tpu.memory_space<vmem>>, %arg3: memref<96x1xf32, #tpu.memory_space<vmem>>, %arg4: memref<32x32xbf16, #tpu.memory_space<vmem>>, %arg5: memref<1x32xf32, #tpu.memory_space<vmem>>, %arg6: memref<1x8x32xf32, #tpu.memory_space<vmem>>) attributes {dimension_semantics = [#tpu.dimension_semantics<parallel>], iteration_bounds = array<i64: 2>, scalar_prefetch = 0 : i64, scratch_operands = 0 : i64, tpu.core_type = #tpu.core_type<tc>, window_params = [{transform_indices = @transform_0, window_bounds = array<i64: 1, 32, 8>}, {pipeline_mode = #tpu.pipeline_mode<synchronous>, transform_indices = @transform_1, window_bounds = array<i64: 96, 32>}, {pipeline_mode = #tpu.pipeline_mode<synchronous>, transform_indices = @transform_2, window_bounds = array<i64: 96, 1>}, {pipeline_mode = #tpu.pipeline_mode<synchronous>, transform_indices = @transform_3, window_bounds = array<i64: 32, 32>}, {pipeline_mode = #tpu.pipeline_mode<synchronous>, transform_indices = @transform_4, window_bounds = array<i64: 1, 32>}, {transform_indices = @transform_5, window_bounds = array<i64: 1, 8, 32>}]} {
    %c0 = arith.constant 0 : index
    %c0_0 = arith.constant 0 : index
    %c0_1 = arith.constant 0 : index
    %0 = vector.load %arg1[%c0, %c0_0, %c0_1] : memref<1x32x8xf32, #tpu.memory_space<vmem>>, vector<1x32x8xf32>
    %1 = vector.shape_cast %0 : vector<1x32x8xf32> to vector<32x8xf32>
    %2 = arith.truncf %1 : vector<32x8xf32> to vector<32x8xbf16>
    %c0_2 = arith.constant 0 : index
    %c0_3 = arith.constant 0 : index
    %3 = vector.load %arg2[%c0_2, %c0_3] : memref<96x32xbf16, #tpu.memory_space<vmem>>, vector<96x32xbf16>
    %cst = arith.constant dense<0.000000e+00> : vector<96x8xf32>
    %4 = tpu.matmul %3, %2, %cst {dimension_numbers = #tpu.dot_dimension_numbers<[1], [0], [0], [1], [0, 0, 1, 1], [], []>} : vector<96x32xbf16>, vector<32x8xbf16>, vector<96x8xf32> -> vector<96x8xf32>
    %c0_4 = arith.constant 0 : index
    %c0_5 = arith.constant 0 : index
    %5 = vector.load %arg3[%c0_4, %c0_5] : memref<96x1xf32, #tpu.memory_space<vmem>>, vector<96x1xf32>
    %6 = vector.broadcast %5 : vector<96x1xf32> to vector<96x8xf32>
    %7 = arith.addf %4, %6 : vector<96x8xf32>
    %8 = vector.shape_cast %7 : vector<96x8xf32> to vector<12x8x8xf32>
    %9 = vector.extract_strided_slice %8 {offsets = [0, 0, 0], sizes = [4, 8, 8], strides = [1, 1, 1]} : vector<12x8x8xf32> to vector<4x8x8xf32>
    %10 = vector.extract_strided_slice %8 {offsets = [4, 0, 0], sizes = [4, 8, 8], strides = [1, 1, 1]} : vector<12x8x8xf32> to vector<4x8x8xf32>
    %11 = vector.extract_strided_slice %8 {offsets = [8, 0, 0], sizes = [4, 8, 8], strides = [1, 1, 1]} : vector<12x8x8xf32> to vector<4x8x8xf32>
    %12 = tpu.transpose %9, [0, 2, 1] : vector<4x8x8xf32> -> vector<4x8x8xf32>
    %13 = arith.truncf %12 : vector<4x8x8xf32> to vector<4x8x8xbf16>
    %14 = arith.truncf %10 : vector<4x8x8xf32> to vector<4x8x8xbf16>
    "tpu.trace_start"() <{level = 10 : i32, message = "hqd,hdk->hqk"}> : () -> ()
    %cst_6 = arith.constant dense<0.000000e+00> : vector<4x8x8xf32>
    %15 = tpu.matmul %13, %14, %cst_6 {dimension_numbers = #tpu.dot_dimension_numbers<[2], [1], [1], [2], [0, 0, 0, 1, 1, 2], [0], [0]>} : vector<4x8x8xbf16>, vector<4x8x8xbf16>, vector<4x8x8xf32> -> vector<4x8x8xf32>
    "tpu.trace_stop"() : () -> ()
    %cst_7 = arith.constant dense<0xFF800000> : vector<4x8xf32>
    %16 = vector.multi_reduction <maximumf>, %15, %cst_7 [2] : vector<4x8x8xf32> to vector<4x8xf32>
    %17 = vector.shape_cast %16 : vector<4x8xf32> to vector<4x8x1xf32>
    %18 = vector.broadcast %17 : vector<4x8x1xf32> to vector<4x8x8xf32>
    %19 = arith.subf %15, %18 : vector<4x8x8xf32>
    %20 = math.exp %19 : vector<4x8x8xf32>
    %cst_8 = arith.constant dense<0.000000e+00> : vector<4x8xf32>
    %21 = vector.multi_reduction <add>, %20, %cst_8 [2] : vector<4x8x8xf32> to vector<4x8xf32>
    %22 = vector.shape_cast %21 : vector<4x8xf32> to vector<4x8x1xf32>
    %23 = tpu.reciprocal %22 {approx = true} : vector<4x8x1xf32> -> vector<4x8x1xf32>
    %24 = vector.broadcast %23 : vector<4x8x1xf32> to vector<4x8x8xf32>
    %25 = arith.mulf %20, %24 : vector<4x8x8xf32>
    %26 = arith.truncf %11 : vector<4x8x8xf32> to vector<4x8x8xbf16>
    %27 = arith.truncf %25 : vector<4x8x8xf32> to vector<4x8x8xbf16>
    "tpu.trace_start"() <{level = 10 : i32, message = "hdk,hqk->hdq"}> : () -> ()
    %cst_9 = arith.constant dense<0.000000e+00> : vector<4x8x8xf32>
    %28 = tpu.matmul %26, %27, %cst_9 {dimension_numbers = #tpu.dot_dimension_numbers<[2], [2], [1], [1], [0, 0, 0, 1, 1, 1], [0], [0]>} : vector<4x8x8xbf16>, vector<4x8x8xbf16>, vector<4x8x8xf32> -> vector<4x8x8xf32>
    "tpu.trace_stop"() : () -> ()
    %29 = vector.shape_cast %28 : vector<4x8x8xf32> to vector<32x8xf32>
    %30 = tpu.transpose %29, [1, 0] : vector<32x8xf32> -> vector<8x32xf32>
    %31 = arith.truncf %30 : vector<8x32xf32> to vector<8x32xbf16>
    %c0_10 = arith.constant 0 : index
    %c0_11 = arith.constant 0 : index
    %32 = vector.load %arg4[%c0_10, %c0_11] : memref<32x32xbf16, #tpu.memory_space<vmem>>, vector<32x32xbf16>
    %cst_12 = arith.constant dense<0.000000e+00> : vector<8x32xf32>
    %33 = tpu.matmul %31, %32, %cst_12 {dimension_numbers = #tpu.dot_dimension_numbers<[1], [0], [0], [1], [0, 0, 1, 1], [], []>} : vector<8x32xbf16>, vector<32x32xbf16>, vector<8x32xf32> -> vector<8x32xf32>
    %c0_13 = arith.constant 0 : index
    %c0_14 = arith.constant 0 : index
    %34 = vector.load %arg5[%c0_13, %c0_14] : memref<1x32xf32, #tpu.memory_space<vmem>>, vector<1x32xf32>
    %35 = vector.broadcast %34 : vector<1x32xf32> to vector<8x32xf32>
    %36 = arith.addf %33, %35 : vector<8x32xf32>
    %c0_15 = arith.constant 0 : index
    %c0_16 = arith.constant 0 : index
    %c0_17 = arith.constant 0 : index
    %37 = vector.load %arg6[%c0_15, %c0_16, %c0_17] : memref<1x8x32xf32, #tpu.memory_space<vmem>>, vector<1x8x32xf32>
    %38 = vector.shape_cast %37 : vector<1x8x32xf32> to vector<8x32xf32>
    %39 = vector.shape_cast %36 : vector<8x32xf32> to vector<1x8x32xf32>
    tpu.vector_store %arg6[%c0_15, %c0_16, %c0_17], %39 {strides = array<i32>} : memref<1x8x32xf32, #tpu.memory_space<vmem>>, vector<1x8x32xf32>,
    return
  }
  func.func @transform_0(%arg0: i32) -> (i32, i32, i32) {
    %c0_i32 = arith.constant 0 : i32
    %c0_i32_0 = arith.constant 0 : i32
    %c0_i32_1 = arith.constant 0 : i32
    return %arg0, %c0_i32, %c0_i32_0 : i32, i32, i32
  }
  func.func @transform_1(%arg0: i32) -> (i32, i32) {
    %c0_i32 = arith.constant 0 : i32
    %c0_i32_0 = arith.constant 0 : i32
    %c0_i32_1 = arith.constant 0 : i32
    return %c0_i32, %c0_i32_0 : i32, i32
  }
  func.func @transform_2(%arg0: i32) -> (i32, i32) {
    %c0_i32 = arith.constant 0 : i32
    %c0_i32_0 = arith.constant 0 : i32
    %c0_i32_1 = arith.constant 0 : i32
    return %c0_i32, %c0_i32_0 : i32, i32
  }
  func.func @transform_3(%arg0: i32) -> (i32, i32) {
    %c0_i32 = arith.constant 0 : i32
    %c0_i32_0 = arith.constant 0 : i32
    %c0_i32_1 = arith.constant 0 : i32
    return %c0_i32, %c0_i32_0 : i32, i32
  }
  func.func @transform_4(%arg0: i32) -> (i32, i32) {
    %c0_i32 = arith.constant 0 : i32
    %c0_i32_0 = arith.constant 0 : i32
    %c0_i32_1 = arith.constant 0 : i32
    return %c0_i32, %c0_i32_0 : i32, i32
  }
  func.func @transform_5(%arg0: i32) -> (i32, i32, i32) {
    %c0_i32 = arith.constant 0 : i32
    %c0_i32_0 = arith.constant 0 : i32
    %c0_i32_1 = arith.constant 0 : i32
    return %arg0, %c0_i32, %c0_i32_0 : i32, i32, i32
  }
}

</mosaic_0001>

<llo_original>
// kernel: tpu_custom_call.1
$region0: #{tpu_custom_call.1}
  #allocation0 [shape = 'u32[]', space=smem, size = 0x4, offset = 0x4, fixed_abs, tag = 'smem constant byte address 0x4 - core index']
  #allocation1 [shape = 'u32[72,128]{1,0:T(1,128)}', space=vmem, size = 0x9000, scoped, tag = 'internal scratch']
  %s0 = inlined_call_operand.vmem [shape: f32[2,32,8], index: 0, kind: input, shape index: {}]
  %s1 = inlined_call_operand.vmem [shape: bf16[96,32], index: 1, kind: input, shape index: {}]
  %s2 = inlined_call_operand.vmem [shape: f32[96,1], index: 2, kind: input, shape index: {}]
  %s3 = inlined_call_operand.vmem [shape: bf16[32,32], index: 3, kind: input, shape index: {}]
  %s4 = inlined_call_operand.vmem [shape: f32[1,32], index: 4, kind: input, shape index: {}]
  %s5 = inlined_call_operand.hbm [shape: f32[2,8,32], index: 5, kind: output, shape index: {}]
  %s6 = sld [smem:[#allocation0]]
  $region53: #{tpu_custom_call.1} parent=0
    _
  %s8 = ssub.s32 1, %s6
  %s9 = scalar_select 0, %s8, %s6
  $region1: #{tpu_custom_call.1} parent=0
    #allocation2 [shape = 'u8[8192]{0}', space=vmem, size = 0x2000, scoped, tag = 'output window, operand 0']
    #allocation3 [shape = 's32[2]{0}', space=sflag, size = 0x8, scoped, tag = 'scoped memory for tpu_custom_call.1']
    %10 = vsyncpa [#allocation3], 0
    %s11 = scalar_lea.sflag [#allocation3], 1
    %12 = vsyncpa %s11, 0
    loop: start=0, step=1, limit=4
    $region2: #{tpu_custom_call.1} parent=1 // loop_pre_header
      _
    $region3: #{tpu_custom_call.1} parent=1 // loop_header
      %s14 = sphi 0, %s18
      %p15 = scmp.ge.s32.totalorder %s14, 4
      %s24 = sphi 0, %s26
      %s27 = sphi 0, %s24
      %s28 = sphi 0, %s27
      %s44 = sphi 0, %s28
      %s48 = sphi 0, %s48
      %s50 = sphi 0, %s48
      %s51 = sphi 0, %s50
      %s65 = sphi 0, %s51
      %s69 = sphi 0, %s69
      %s71 = sphi 0, %s69
      %s72 = sphi 0, %s71
      %s86 = sphi 0, %s72
      %s90 = sphi 0, %s90
      %s92 = sphi 0, %s90
      %s93 = sphi 0, %s92
      %s107 = sphi 0, %s93
      %s111 = sphi 0, %s111
      %s113 = sphi 0, %s111
      %s114 = sphi 0, %s113
      %s128 = sphi 0, %s114
      %s134 = sphi 0, %s136
      %s137 = sphi 0, %s134
      %s138 = sphi 0, %s137
      %s154 = sphi 0, %s138
    $region4: #{tpu_custom_call.1} parent=1 // loop_header_branch
      %17 = sbr.rel (%p15) target = $region8
    $region5: #{tpu_custom_call.1} parent=1 // loop_body
      %s19 = ssub.s32 %s14, 1
      %s20 = ssub.s32 %s14, 2
      %s21 = sadd.s32 %s14, 1
      %s22 = ssub.s32 %s14, %s21
      %p23 = scmp.eq.s32.totalorder %s22, 0
      %s25 = sadd.s32 %s24, 1
      %s26 = scalar_select %p23, %s24, %s25
      %p29 = pneg %p23
      %p30 = scmp.eq.s32.totalorder %s14, 1
      %p31 = por %p29, %p30
      %p32 = scmp.ne.s32.totalorder %s24, %s27
      %p33 = scmp.eq.s32.totalorder %s14, 0
      %p34 = por %p32, %p33
      %p35 = scmp.ne.s32.totalorder %s24, %s27
      %p36 = scmp.eq.s32.totalorder %s19, 1
      %p37 = por %p35, %p36
      %p38 = scmp.ne.s32.totalorder %s27, %s28
      %p39 = scmp.eq.s32.totalorder %s19, 0
      %p40 = por %p38, %p39
      %p41 = scmp.ne.s32.totalorder %s27, %s28
      %p42 = scmp.eq.s32.totalorder %s20, 1
      %p43 = por %p41, %p42
      %p45 = scmp.ne.s32.totalorder %s28, %s44
      %p46 = scmp.eq.s32.totalorder %s20, 0
      %p47 = por %p45, %p46
      %s49 = sadd.s32 %s48, 1
      %p52 = scmp.eq.s32.totalorder %s14, 1
      %p53 = scmp.ne.s32.totalorder %s48, %s50
      %p54 = scmp.eq.s32.totalorder %s14, 0
      %p55 = por %p53, %p54
      %p56 = scmp.ne.s32.totalorder %s48, %s50
      %p57 = scmp.eq.s32.totalorder %s19, 1
      %p58 = por %p56, %p57
      %p59 = scmp.ne.s32.totalorder %s50, %s51
      %p60 = scmp.eq.s32.totalorder %s19, 0
      %p61 = por %p59, %p60
      %p62 = scmp.ne.s32.totalorder %s50, %s51
      %p63 = scmp.eq.s32.totalorder %s20, 1
      %p64 = por %p62, %p63
      %p66 = scmp.ne.s32.totalorder %s51, %s65
      %p67 = scmp.eq.s32.totalorder %s20, 0
      %p68 = por %p66, %p67
      %s70 = sadd.s32 %s69, 1
      %p73 = scmp.eq.s32.totalorder %s14, 1
      %p74 = scmp.ne.s32.totalorder %s69, %s71
      %p75 = scmp.eq.s32.totalorder %s14, 0
      %p76 = por %p74, %p75
      %p77 = scmp.ne.s32.totalorder %s69, %s71
      %p78 = scmp.eq.s32.totalorder %s19, 1
      %p79 = por %p77, %p78
      %p80 = scmp.ne.s32.totalorder %s71, %s72
      %p81 = scmp.eq.s32.totalorder %s19, 0
      %p82 = por %p80, %p81
      %p83 = scmp.ne.s32.totalorder %s71, %s72
      %p84 = scmp.eq.s32.totalorder %s20, 1
      %p85 = por %p83, %p84
      %p87 = scmp.ne.s32.totalorder %s72, %s86
      %p88 = scmp.eq.s32.totalorder %s20, 0
      %p89 = por %p87, %p88
      %s91 = sadd.s32 %s90, 1
      %p94 = scmp.eq.s32.totalorder %s14, 1
      %p95 = scmp.ne.s32.totalorder %s90, %s92
      %p96 = scmp.eq.s32.totalorder %s14, 0
      %p97 = por %p95, %p96
      %p98 = scmp.ne.s32.totalorder %s90, %s92
      %p99 = scmp.eq.s32.totalorder %s19, 1
      %p100 = por %p98, %p99
      %p101 = scmp.ne.s32.totalorder %s92, %s93
      %p102 = scmp.eq.s32.totalorder %s19, 0
      %p103 = por %p101, %p102
      %p104 = scmp.ne.s32.totalorder %s92, %s93
      %p105 = scmp.eq.s32.totalorder %s20, 1
      %p106 = por %p104, %p105
      %p108 = scmp.ne.s32.totalorder %s93, %s107
      %p109 = scmp.eq.s32.totalorder %s20, 0
      %p110 = por %p108, %p109
      %s112 = sadd.s32 %s111, 1
      %p115 = scmp.eq.s32.totalorder %s14, 1
      %p116 = scmp.ne.s32.totalorder %s111, %s113
      %p117 = scmp.eq.s32.totalorder %s14, 0
      %p118 = por %p116, %p117
      %p119 = scmp.ne.s32.totalorder %s111, %s113
      %p120 = scmp.eq.s32.totalorder %s19, 1
      %p121 = por %p119, %p120
      %p122 = scmp.ne.s32.totalorder %s113, %s114
      %p123 = scmp.eq.s32.totalorder %s19, 0
      %p124 = por %p122, %p123
      %p125 = scmp.ne.s32.totalorder %s113, %s114
      %p126 = scmp.eq.s32.totalorder %s20, 1
      %p127 = por %p125, %p126
      %p129 = scmp.ne.s32.totalorder %s114, %s128
      %p130 = scmp.eq.s32.totalorder %s20, 0
      %p131 = por %p129, %p130
      %s132 = ssub.s32 %s14, %s21
      %p133 = scmp.eq.s32.totalorder %s132, 0
      %s135 = sadd.s32 %s134, 1
      %s136 = scalar_select %p133, %s134, %s135
      %p139 = pneg %p133
      %p140 = scmp.eq.s32.totalorder %s14, 1
      %p141 = por %p139, %p140
      %p142 = scmp.ne.s32.totalorder %s134, %s137
      %p143 = scmp.eq.s32.totalorder %s14, 0
      %p144 = por %p142, %p143
      %p145 = scmp.ne.s32.totalorder %s134, %s137
      %p146 = scmp.eq.s32.totalorder %s19, 1
      %p147 = por %p145, %p146
      %p148 = scmp.ne.s32.totalorder %s137, %s138
      %p149 = scmp.eq.s32.totalorder %s19, 0
      %p150 = por %p148, %p149
      %p151 = scmp.ne.s32.totalorder %s137, %s138
      %p152 = scmp.eq.s32.totalorder %s20, 1
      %p153 = por %p151, %p152
      %p155 = scmp.ne.s32.totalorder %s138, %s154
      %p156 = scmp.eq.s32.totalorder %s20, 0
      %p157 = por %p155, %p156
      %p158 = scmp.le.s32.totalorder 1, %s14
      %p159 = scmp.lt.s32.totalorder %s14, 3
      %p160 = pnand %p158, %p159
      %p161 = pneg %p160
      // Predicated region
      $region9: #{tpu_custom_call.1} parent=5 // pred_check
        _
      $region10: #{tpu_custom_call.1} parent=5 // pred_check_branch
        %163 = sbr.rel (%p160) target = $region12
      $region11: #{tpu_custom_call.1} parent=5 // pred_region
        %s164 = ssub.s32 %s14, 1
        // Predicated region
        $region13: #{tpu_custom_call.1} parent=11 // pred_check
          %p165 = pneg %p61
        $region14: #{tpu_custom_call.1} parent=11 // pred_check_branch
          %167 = sbr.rel (%p165) target = $region16
        $region15: #{tpu_custom_call.1} parent=11 // pred_region
          _
        $region16: #{tpu_custom_call.1} parent=11 // pred_fallthru
          _
        // Predicated region
        $region17: #{tpu_custom_call.1} parent=11 // pred_check
          %p168 = pneg %p82
        $region18: #{tpu_custom_call.1} parent=11 // pred_check_branch
          %170 = sbr.rel (%p168) target = $region20
        $region19: #{tpu_custom_call.1} parent=11 // pred_region
          _
        $region20: #{tpu_custom_call.1} parent=11 // pred_fallthru
          _
        // Predicated region
        $region21: #{tpu_custom_call.1} parent=11 // pred_check
          %p171 = pneg %p103
        $region22: #{tpu_custom_call.1} parent=11 // pred_check_branch
          %173 = sbr.rel (%p171) target = $region24
        $region23: #{tpu_custom_call.1} parent=11 // pred_region
          _
        $region24: #{tpu_custom_call.1} parent=11 // pred_fallthru
          _
        // Predicated region
        $region25: #{tpu_custom_call.1} parent=11 // pred_check
          %p174 = pneg %p124
        $region26: #{tpu_custom_call.1} parent=11 // pred_check_branch
          %176 = sbr.rel (%p174) target = $region28
        $region27: #{tpu_custom_call.1} parent=11 // pred_region
          _
        $region28: #{tpu_custom_call.1} parent=11 // pred_fallthru
          _
      $region12: #{tpu_custom_call.1} parent=5 // pred_fallthru
        _
      %p177 = scmp.lt.s32.totalorder %s14, 2
      // Predicated region
      $region29: #{tpu_custom_call.1} parent=5 // pred_check
        %p178 = pneg %p177
      $region30: #{tpu_custom_call.1} parent=5 // pred_check_branch
        %180 = sbr.rel (%p178) target = $region32
      $region31: #{tpu_custom_call.1} parent=5 // pred_region
        // Predicated region
        $region33: #{tpu_custom_call.1} parent=31 // pred_check
          %p181 = pneg %p34
        $region34: #{tpu_custom_call.1} parent=31 // pred_check_branch
          %183 = sbr.rel (%p181) target = $region36
        $region35: #{tpu_custom_call.1} parent=31 // pred_region
          %p184 = scmp.lt.s32.totalorder %s14, 1
          %s185 = scalar_select %p184, %s14, 1
          %s186 = smul.addr %s185, 4
          %s187 = smul.addr %s186, 8
          %s188 = scalar_lea.vmem %s0, %s187
        $region36: #{tpu_custom_call.1} parent=31 // pred_fallthru
          _
      $region32: #{tpu_custom_call.1} parent=5 // pred_fallthru
        _
      %p189 = scmp.le.s32.totalorder 1, %s14
      %p190 = scmp.lt.s32.totalorder %s14, 3
      %p191 = pnand %p189, %p190
      %p192 = pneg %p191
      // Predicated region
      $region37: #{tpu_custom_call.1} parent=5 // pred_check
        _
      $region38: #{tpu_custom_call.1} parent=5 // pred_check_branch
        %194 = sbr.rel (%p191) target = $region40
      $region39: #{tpu_custom_call.1} parent=5 // pred_region
        %s195 = ssub.s32 %s14, 1
        %p196 = scmp.lt.s32.totalorder %s19, 1
        %s197 = scalar_select %p196, %s19, 1
        %s198 = smul.addr %s197, 4
        %s199 = smul.addr %s198, 8
        %s200 = scalar_lea.vmem %s0, %s199
        %p201 = pneg %p40
        %p202 = pneg %p37
        %p203 = pneg %p61
        %p204 = pneg %p58
        %p205 = pneg %p82
        %p206 = pneg %p79
        %p207 = pneg %p103
        %p208 = pneg %p100
        %p209 = pneg %p124
        %p210 = pneg %p121
        %p211 = pneg %p150
        %p212 = pneg %p147
        %s213 = sand.u32 %s137, 1
        %s214 = scalar_lea.sflag [#allocation3], %s213
        %s215 = sand.u32 %s137, 1
        %s216 = smul.addr %s215, 8
        %s217 = scalar_lea.vmem [#allocation2], %s216
        %p218 = scmp.lt.s32.totalorder %s19, 1
        %s219 = scalar_select %p218, %s19, 1
        %s220 = smul.addr %s219, 4
        %s221 = smul.addr %s220, 8
        %s222 = scalar_lea.vmem %s0, %s221
        %v224 = vld [vmem:[%s222] sm:$0xff]
        %v225 = vld [vmem:[%s222 + $0x8] sm:$0xff]
        %v226 = vld [vmem:[%s222 + $0x10] sm:$0xff]
        %v227 = vld [vmem:[%s222 + $0x18] sm:$0xff]
        %v228 = vpack.c.bf16 %v225, %v224
        %v229 = vpack.c.bf16 %v227, %v226
        %v230 = vld [vmem:[%s1] sm:$0xf]
        %v231 = vld [vmem:[%s1 + $0x4] sm:$0xf]
        %v232 = vld [vmem:[%s1 + $0x8] sm:$0xf]
        %v233 = vld [vmem:[%s1 + $0xc] sm:$0xf]
        %v234 = vld [vmem:[%s1 + $0x10] sm:$0xf]
        %v235 = vld [vmem:[%s1 + $0x14] sm:$0xf]
        %v236 = vld [vmem:[%s1 + $0x18] sm:$0xf]
        %v237 = vld [vmem:[%s1 + $0x1c] sm:$0xf]
        %v238 = vld [vmem:[%s1 + $0x20] sm:$0xf]
        %v239 = vld [vmem:[%s1 + $0x24] sm:$0xf]
        %v240 = vld [vmem:[%s1 + $0x28] sm:$0xf]
        %v241 = vld [vmem:[%s1 + $0x2c] sm:$0xf]
        %v242 = vld [vmem:[%s2] sm:$0xff]
        %v243 = vld [vmem:[%s2 + $0x8] sm:$0xff]
        %v244 = vld [vmem:[%s2 + $0x10] sm:$0xff]
        %v245 = vld [vmem:[%s2 + $0x18] sm:$0xff]
        %v246 = vld [vmem:[%s2 + $0x20] sm:$0xff]
        %v247 = vld [vmem:[%s2 + $0x28] sm:$0xff]
        %v248 = vld [vmem:[%s2 + $0x30] sm:$0xff]
        %v249 = vld [vmem:[%s2 + $0x38] sm:$0xff]
        %v250 = vld [vmem:[%s2 + $0x40] sm:$0xff]
        %v251 = vld [vmem:[%s2 + $0x48] sm:$0xff]
        %v252 = vld [vmem:[%s2 + $0x50] sm:$0xff]
        %v253 = vld [vmem:[%s2 + $0x58] sm:$0xff]
        %255 = vset.pattern.permute.xlu0 0
        %256 = vperm.xlu0 %255, %v242
        %v257 = vpop.permute.xlu0 %256
        %260 = vset.pattern.permute.xlu0 0
        %261 = vperm.xlu0 %260, %v243
        %v262 = vpop.permute.xlu0 %261
        %265 = vset.pattern.permute.xlu0 0
        %266 = vperm.xlu0 %265, %v244
        %v267 = vpop.permute.xlu0 %266
        %270 = vset.pattern.permute.xlu0 0
        %271 = vperm.xlu0 %270, %v245
        %v272 = vpop.permute.xlu0 %271
        %275 = vset.pattern.permute.xlu0 0
        %276 = vperm.xlu0 %275, %v246
        %v277 = vpop.permute.xlu0 %276
        %280 = vset.pattern.permute.xlu0 0
        %281 = vperm.xlu0 %280, %v247
        %v282 = vpop.permute.xlu0 %281
        %285 = vset.pattern.permute.xlu0 0
        %286 = vperm.xlu0 %285, %v248
        %v287 = vpop.permute.xlu0 %286
        %290 = vset.pattern.permute.xlu0 0
        %291 = vperm.xlu0 %290, %v249
        %v292 = vpop.permute.xlu0 %291
        %295 = vset.pattern.permute.xlu0 0
        %296 = vperm.xlu0 %295, %v250
        %v297 = vpop.permute.xlu0 %296
        %300 = vset.pattern.permute.xlu0 0
        %301 = vperm.xlu0 %300, %v251
        %v302 = vpop.permute.xlu0 %301
        %305 = vset.pattern.permute.xlu0 0
        %306 = vperm.xlu0 %305, %v252
        %v307 = vpop.permute.xlu0 %306
        %310 = vset.pattern.permute.xlu0 0
        %311 = vperm.xlu0 %310, %v253
        %v312 = vpop.permute.xlu0 %311
        %v326 = vunpack.c.l.b16 %v230
        %v327 = vunpack.c.l.b16 %v231
        %v328 = vunpack.c.l.b16 %v232
        %v329 = vunpack.c.l.b16 %v233
        %v330 = vunpack.c.l.b16 %v234
        %v331 = vunpack.c.l.b16 %v235
        %v332 = vunpack.c.l.b16 %v236
        %v333 = vunpack.c.l.b16 %v237
        %v334 = vunpack.c.l.b16 %v238
        %v335 = vunpack.c.l.b16 %v239
        %v336 = vunpack.c.l.b16 %v240
        %v337 = vunpack.c.l.b16 %v241
        %v338 = vpack.c.b16 %v327, %v326
        %v339 = vpack.c.b16 %v329, %v328
        %v340 = vpack.c.b16 %v331, %v330
        %v341 = vpack.c.b16 %v333, %v332
        %v342 = vpack.c.b16 %v335, %v334
        %v343 = vpack.c.b16 %v337, %v336
        %vm344 = vcmask 261120
        %v346 = vsel %vm344, %v338, 0
        %v349 = vsel %vm344, %v339, 0
        %v352 = vsel %vm344, %v340, 0
        %v355 = vsel %vm344, %v341, 0
        %v358 = vsel %vm344, %v342, 0
        %v361 = vsel %vm344, %v343, 0
        %363 = vmatpush.bf16.msra.mxu0 0
        %364 = vmatpush.bf16.msra.mxu0 0
        %365 = vmatpush.bf16.msra.mxu0 0
        %366 = vmatpush.bf16.msra.mxu0 0
        %367 = vmatpush.bf16.msra.mxu0 0
        %368 = vmatpush.bf16.msra.mxu0 0
        %369 = vmatpush.bf16.msra.mxu0 %v229
        %370 = vmatpush.bf16.msra.mxu0 %v228
        %371 = vmatmul.bf16.gmra.mxu0 %v346
        %v372 = vpop.f32.mrf.mxu0
        %v373 = vadd.f32 %v257, %v372
        %v374 = vpop.f32.mrf.mxu0
        %v375 = vadd.f32 %v262, %v374
        %376 = vmatmul.bf16.gmra.mxu0 %v349
        %v377 = vpop.f32.mrf.mxu0
        %v378 = vadd.f32 %v267, %v377
        %v379 = vpop.f32.mrf.mxu0
        %v380 = vadd.f32 %v272, %v379
        %381 = vmatmul.bf16.gmra.mxu0 %v352
        %v382 = vpop.f32.mrf.mxu0
        %v383 = vadd.f32 %v277, %v382
        %v384 = vpop.f32.mrf.mxu0
        %v385 = vadd.f32 %v282, %v384
        %386 = vmatmul.bf16.gmra.mxu0 %v355
        %v387 = vpop.f32.mrf.mxu0
        %v388 = vadd.f32 %v287, %v387
        %v389 = vpop.f32.mrf.mxu0
        %v390 = vadd.f32 %v292, %v389
        %391 = vmatmul.bf16.gmra.mxu0 %v358
        %v392 = vpop.f32.mrf.mxu0
        %v393 = vadd.f32 %v297, %v392
        %v394 = vpop.f32.mrf.mxu0
        %v395 = vadd.f32 %v302, %v394
        %396 = vmatmul.bf16.gmra.mxu0 %v361
        %v397 = vpop.f32.mrf.mxu0
        %v398 = vadd.f32 %v307, %v397
        %v399 = vpop.f32.mrf.mxu0
        %v400 = vadd.f32 %v312, %v399
        %401 = vdwg.mxu0
        %402 = vxpose.xlu0.b32.start [1/16] %v373, 128
        %403 = vxpose.xlu0.b32.cont [2/16] 0.0, 128
        %404 = vxpose.xlu0.b32.cont [3/16] 0.0, 128
        %405 = vxpose.xlu0.b32.cont [4/16] 0.0, 128
        %406 = vxpose.xlu0.b32.cont [5/16] 0.0, 128
        %407 = vxpose.xlu0.b32.cont [6/16] 0.0, 128
        %408 = vxpose.xlu0.b32.cont [7/16] 0.0, 128
        %409 = vxpose.xlu0.b32.cont [8/16] 0.0, 128
        %410 = vxpose.xlu0.b32.cont [9/16] 0.0, 128
        %411 = vxpose.xlu0.b32.cont [10/16] 0.0, 128
        %412 = vxpose.xlu0.b32.cont [11/16] 0.0, 128
        %413 = vxpose.xlu0.b32.cont [12/16] 0.0, 128
        %414 = vxpose.xlu0.b32.cont [13/16] 0.0, 128
        %415 = vxpose.xlu0.b32.cont [14/16] 0.0, 128
        %416 = vxpose.xlu0.b32.cont [15/16] 0.0, 128
        %417 = vxpose.xlu0.b32.end [16/16] 0.0, 128
        %v418 = vpop.trf.xlu0
        %v419 = vpop.trf.xlu0
        %v420 = vpop.trf.xlu0
        %v421 = vpop.trf.xlu0
        %v422 = vpop.trf.xlu0
        %v423 = vpop.trf.xlu0
        %v424 = vpop.trf.xlu0
        %v425 = vpop.trf.xlu0
        %v426 = vpop.trf.xlu0
        %v427 = vpop.trf.xlu0
        %v428 = vpop.trf.xlu0
        %v429 = vpop.trf.xlu0
        %v430 = vpop.trf.xlu0
        %v431 = vpop.trf.xlu0
        %v432 = vpop.trf.xlu0
        %v433 = vpop.trf.xlu0
        %434 = vxpose.xlu0.b32.start [1/16] %v375, 128
        %435 = vxpose.xlu0.b32.cont [2/16] 0.0, 128
        %436 = vxpose.xlu0.b32.cont [3/16] 0.0, 128
        %437 = vxpose.xlu0.b32.cont [4/16] 0.0, 128
        %438 = vxpose.xlu0.b32.cont [5/16] 0.0, 128
        %439 = vxpose.xlu0.b32.cont [6/16] 0.0, 128
        %440 = vxpose.xlu0.b32.cont [7/16] 0.0, 128
        %441 = vxpose.xlu0.b32.cont [8/16] 0.0, 128
        %442 = vxpose.xlu0.b32.cont [9/16] 0.0, 128
        %443 = vxpose.xlu0.b32.cont [10/16] 0.0, 128
        %444 = vxpose.xlu0.b32.cont [11/16] 0.0, 128
        %445 = vxpose.xlu0.b32.cont [12/16] 0.0, 128
        %446 = vxpose.xlu0.b32.cont [13/16] 0.0, 128
        %447 = vxpose.xlu0.b32.cont [14/16] 0.0, 128
        %448 = vxpose.xlu0.b32.cont [15/16] 0.0, 128
        %449 = vxpose.xlu0.b32.end [16/16] 0.0, 128
        %v450 = vpop.trf.xlu0
        %v451 = vpop.trf.xlu0
        %v452 = vpop.trf.xlu0
        %v453 = vpop.trf.xlu0
        %v454 = vpop.trf.xlu0
        %v455 = vpop.trf.xlu0
        %v456 = vpop.trf.xlu0
        %v457 = vpop.trf.xlu0
        %v458 = vpop.trf.xlu0
        %v459 = vpop.trf.xlu0
        %v460 = vpop.trf.xlu0
        %v461 = vpop.trf.xlu0
        %v462 = vpop.trf.xlu0
        %v463 = vpop.trf.xlu0
        %v464 = vpop.trf.xlu0
        %v465 = vpop.trf.xlu0
        %466 = vxpose.xlu0.b32.start [1/16] %v378, 128
        %467 = vxpose.xlu0.b32.cont [2/16] 0.0, 128
        %468 = vxpose.xlu0.b32.cont [3/16] 0.0, 128
        %469 = vxpose.xlu0.b32.cont [4/16] 0.0, 128
        %470 = vxpose.xlu0.b32.cont [5/16] 0.0, 128
        %471 = vxpose.xlu0.b32.cont [6/16] 0.0, 128
        %472 = vxpose.xlu0.b32.cont [7/16] 0.0, 128
        %473 = vxpose.xlu0.b32.cont [8/16] 0.0, 128
        %474 = vxpose.xlu0.b32.cont [9/16] 0.0, 128
        %475 = vxpose.xlu0.b32.cont [10/16] 0.0, 128
        %476 = vxpose.xlu0.b32.cont [11/16] 0.0, 128
        %477 = vxpose.xlu0.b32.cont [12/16] 0.0, 128
        %478 = vxpose.xlu0.b32.cont [13/16] 0.0, 128
        %479 = vxpose.xlu0.b32.cont [14/16] 0.0, 128
        %480 = vxpose.xlu0.b32.cont [15/16] 0.0, 128
        %481 = vxpose.xlu0.b32.end [16/16] 0.0, 128
        %v482 = vpop.trf.xlu0
        %v483 = vpop.trf.xlu0
        %v484 = vpop.trf.xlu0
        %v485 = vpop.trf.xlu0
        %v486 = vpop.trf.xlu0
        %v487 = vpop.trf.xlu0
        %v488 = vpop.trf.xlu0
        %v489 = vpop.trf.xlu0
        %v490 = vpop.trf.xlu0
        %v491 = vpop.trf.xlu0
        %v492 = vpop.trf.xlu0
        %v493 = vpop.trf.xlu0
        %v494 = vpop.trf.xlu0
        %v495 = vpop.trf.xlu0
        %v496 = vpop.trf.xlu0
        %v497 = vpop.trf.xlu0
        %498 = vxpose.xlu0.b32.start [1/16] %v380, 128
        %499 = vxpose.xlu0.b32.cont [2/16] 0.0, 128
        %500 = vxpose.xlu0.b32.cont [3/16] 0.0, 128
        %501 = vxpose.xlu0.b32.cont [4/16] 0.0, 128
        %502 = vxpose.xlu0.b32.cont [5/16] 0.0, 128
        %503 = vxpose.xlu0.b32.cont [6/16] 0.0, 128
        %504 = vxpose.xlu0.b32.cont [7/16] 0.0, 128
        %505 = vxpose.xlu0.b32.cont [8/16] 0.0, 128
        %506 = vxpose.xlu0.b32.cont [9/16] 0.0, 128
        %507 = vxpose.xlu0.b32.cont [10/16] 0.0, 128
        %508 = vxpose.xlu0.b32.cont [11/16] 0.0, 128
        %509 = vxpose.xlu0.b32.cont [12/16] 0.0, 128
        %510 = vxpose.xlu0.b32.cont [13/16] 0.0, 128
        %511 = vxpose.xlu0.b32.cont [14/16] 0.0, 128
        %512 = vxpose.xlu0.b32.cont [15/16] 0.0, 128
        %513 = vxpose.xlu0.b32.end [16/16] 0.0, 128
        %v514 = vpop.trf.xlu0
        %v515 = vpop.trf.xlu0
        %v516 = vpop.trf.xlu0
        %v517 = vpop.trf.xlu0
        %v518 = vpop.trf.xlu0
        %v519 = vpop.trf.xlu0
        %v520 = vpop.trf.xlu0
        %v521 = vpop.trf.xlu0
        %v522 = vpop.trf.xlu0
        %v523 = vpop.trf.xlu0
        %v524 = vpop.trf.xlu0
        %v525 = vpop.trf.xlu0
        %v526 = vpop.trf.xlu0
        %v527 = vpop.trf.xlu0
        %v528 = vpop.trf.xlu0
        %v529 = vpop.trf.xlu0
        %v530 = vpack.c.bf16 %v418, %v418
        %v531 = vpack.c.bf16 %v450, %v450
        %v532 = vpack.c.bf16 %v482, %v482
        %v533 = vpack.c.bf16 %v514, %v514
        %v534 = vpack.c.bf16 %v383, %v383
        %v535 = vpack.c.bf16 %v385, %v385
        %v536 = vpack.c.bf16 %v388, %v388
        %v537 = vpack.c.bf16 %v390, %v390
        %vm538 = vcmask 64512
        %v540 = vsel %vm538, %v530, 0
        %vm542 = vcmask 1043456
        %v544 = vsel %vm542, %v534, 0
        %546 = vmatpush.bf16.msra.mxu0 0
        %547 = vmatpush.bf16.msra.mxu0 0
        %548 = vmatpush.bf16.msra.mxu0 0
        %549 = vmatpush.bf16.msra.mxu0 0
        %550 = vmatpush.bf16.msra.mxu0 0
        %551 = vmatpush.bf16.msra.mxu0 0
        %552 = vmatpush.bf16.msra.mxu0 0
        %553 = vmatpush.bf16.msra.mxu0 %v544
        %554 = vmatmul.bf16.gmra.mxu0 %v540
        %v555 = vpop.f32.mrf.mxu0
        %v556 = vadd.f32 0.0, %v555
        %v557 = vpop.f32.mrf.mxu0
        %558 = vdwg.mxu0
        %v560 = vsel %vm538, %v531, 0
        %v563 = vsel %vm542, %v535, 0
        %565 = vmatpush.bf16.msra.mxu0 0
        %566 = vmatpush.bf16.msra.mxu0 0
        %567 = vmatpush.bf16.msra.mxu0 0
        %568 = vmatpush.bf16.msra.mxu0 0
        %569 = vmatpush.bf16.msra.mxu0 0
        %570 = vmatpush.bf16.msra.mxu0 0
        %571 = vmatpush.bf16.msra.mxu0 0
        %572 = vmatpush.bf16.msra.mxu0 %v563
        %573 = vmatmul.bf16.gmra.mxu0 %v560
        %v574 = vpop.f32.mrf.mxu0
        %v575 = vadd.f32 0.0, %v574
        %v576 = vpop.f32.mrf.mxu0
        %577 = vdwg.mxu0
        %v579 = vsel %vm538, %v532, 0
        %v582 = vsel %vm542, %v536, 0
        %584 = vmatpush.bf16.msra.mxu0 0
        %585 = vmatpush.bf16.msra.mxu0 0
        %586 = vmatpush.bf16.msra.mxu0 0
        %587 = vmatpush.bf16.msra.mxu0 0
        %588 = vmatpush.bf16.msra.mxu0 0
        %589 = vmatpush.bf16.msra.mxu0 0
        %590 = vmatpush.bf16.msra.mxu0 0
        %591 = vmatpush.bf16.msra.mxu0 %v582
        %592 = vmatmul.bf16.gmra.mxu0 %v579
        %v593 = vpop.f32.mrf.mxu0
        %v594 = vadd.f32 0.0, %v593
        %v595 = vpop.f32.mrf.mxu0
        %596 = vdwg.mxu0
        %v598 = vsel %vm538, %v533, 0
        %v601 = vsel %vm542, %v537, 0
        %603 = vmatpush.bf16.msra.mxu0 0
        %604 = vmatpush.bf16.msra.mxu0 0
        %605 = vmatpush.bf16.msra.mxu0 0
        %606 = vmatpush.bf16.msra.mxu0 0
        %607 = vmatpush.bf16.msra.mxu0 0
        %608 = vmatpush.bf16.msra.mxu0 0
        %609 = vmatpush.bf16.msra.mxu0 0
        %610 = vmatpush.bf16.msra.mxu0 %v601
        %611 = vmatmul.bf16.gmra.mxu0 %v598
        %v612 = vpop.f32.mrf.mxu0
        %v613 = vadd.f32 0.0, %v612
        %v614 = vpop.f32.mrf.mxu0
        %615 = vdwg.mxu0
        %v616 = vsel %vm538, %v556, -inf
        %617 = vmax.xlane.f32.xlu0 %v616
        %v618 = vpop.xlane.xlu0 %617
        %v619 = vsel %vm538, %v575, -inf
        %620 = vmax.xlane.f32.xlu0 %v619
        %v621 = vpop.xlane.xlu0 %620
        %v622 = vsel %vm538, %v594, -inf
        %623 = vmax.xlane.f32.xlu0 %v622
        %v624 = vpop.xlane.xlu0 %623
        %v625 = vsel %vm538, %v613, -inf
        %626 = vmax.xlane.f32.xlu0 %v625
        %v627 = vpop.xlane.xlu0 %626
        %v628 = vsub.f32 %v556, %v618
        %v629 = vsub.f32 %v575, %v621
        %v630 = vsub.f32 %v594, %v624
        %v631 = vsub.f32 %v613, %v627
        %v632 = vmul.f32 %v628, 1.442695
        %v633 = vpow.pop %v632
        %v634 = vmul.f32 %v629, 1.442695
        %v635 = vpow.pop %v634
        %v636 = vmul.f32 %v630, 1.442695
        %v637 = vpow.pop %v636
        %v638 = vmul.f32 %v631, 1.442695
        %v639 = vpow.pop %v638
        %v640 = vsel %vm538, %v633, 0.0
        %641 = vadd.xlane.f32.xlu0 %v640
        %v642 = vpop.xlane.xlu0 %641
        %v643 = vsel %vm538, %v635, 0.0
        %644 = vadd.xlane.f32.xlu0 %v643
        %v645 = vpop.xlane.xlu0 %644
        %v646 = vsel %vm538, %v637, 0.0
        %647 = vadd.xlane.f32.xlu0 %v646
        %v648 = vpop.xlane.xlu0 %647
        %v649 = vsel %vm538, %v639, 0.0
        %650 = vadd.xlane.f32.xlu0 %v649
        %v651 = vpop.xlane.xlu0 %650
        %v652 = vrcp.pop %v642
        %v653 = vrcp.pop %v645
        %v654 = vrcp.pop %v648
        %v655 = vrcp.pop %v651
        %v656 = vmul.f32 %v633, %v652
        %v657 = vmul.f32 %v635, %v653
        %v658 = vmul.f32 %v637, %v654
        %v659 = vmul.f32 %v639, %v655
        %v660 = vpack.c.bf16 %v393, %v393
        %v661 = vpack.c.bf16 %v395, %v395
        %v662 = vpack.c.bf16 %v398, %v398
        %v663 = vpack.c.bf16 %v400, %v400
        %v664 = vpack.c.bf16 %v656, %v656
        %v665 = vpack.c.bf16 %v657, %v657
        %v666 = vpack.c.bf16 %v658, %v658
        %v667 = vpack.c.bf16 %v659, %v659
        %v669 = vsel %vm538, %v660, 0
        %v672 = vsel %vm538, %v664, 0
        %674 = vmatpush.bf16.xpose.msra.mxu0 0
        %675 = vmatpush.bf16.xpose.msra.mxu0 0
        %676 = vmatpush.bf16.xpose.msra.mxu0 0
        %677 = vmatpush.bf16.xpose.msra.mxu0 0
        %678 = vmatpush.bf16.xpose.msra.mxu0 0
        %679 = vmatpush.bf16.xpose.msra.mxu0 0
        %680 = vmatpush.bf16.xpose.msra.mxu0 0
        %681 = vmatpush.bf16.xpose.msra.mxu0 %v672
        %682 = vmatmul.bf16.gmra.mxu0 %v669
        %v683 = vpop.f32.mrf.mxu0
        %v684 = vadd.f32 0.0, %v683
        %v685 = vpop.f32.mrf.mxu0
        %686 = vdwg.mxu0
        %v688 = vsel %vm538, %v661, 0
        %v691 = vsel %vm538, %v665, 0
        %693 = vmatpush.bf16.xpose.msra.mxu0 0
        %694 = vmatpush.bf16.xpose.msra.mxu0 0
        %695 = vmatpush.bf16.xpose.msra.mxu0 0
        %696 = vmatpush.bf16.xpose.msra.mxu0 0
        %697 = vmatpush.bf16.xpose.msra.mxu0 0
        %698 = vmatpush.bf16.xpose.msra.mxu0 0
        %699 = vmatpush.bf16.xpose.msra.mxu0 0
        %700 = vmatpush.bf16.xpose.msra.mxu0 %v691
        %701 = vmatmul.bf16.gmra.mxu0 %v688
        %v702 = vpop.f32.mrf.mxu0
        %v703 = vadd.f32 0.0, %v702
        %v704 = vpop.f32.mrf.mxu0
        %705 = vdwg.mxu0
        %v707 = vsel %vm538, %v662, 0
        %v710 = vsel %vm538, %v666, 0
        %712 = vmatpush.bf16.xpose.msra.mxu0 0
        %713 = vmatpush.bf16.xpose.msra.mxu0 0
        %714 = vmatpush.bf16.xpose.msra.mxu0 0
        %715 = vmatpush.bf16.xpose.msra.mxu0 0
        %716 = vmatpush.bf16.xpose.msra.mxu0 0
        %717 = vmatpush.bf16.xpose.msra.mxu0 0
        %718 = vmatpush.bf16.xpose.msra.mxu0 0
        %719 = vmatpush.bf16.xpose.msra.mxu0 %v710
        %720 = vmatmul.bf16.gmra.mxu0 %v707
        %v721 = vpop.f32.mrf.mxu0
        %v722 = vadd.f32 0.0, %v721
        %v723 = vpop.f32.mrf.mxu0
        %724 = vdwg.mxu0
        %v726 = vsel %vm538, %v663, 0
        %v729 = vsel %vm538, %v667, 0
        %731 = vmatpush.bf16.xpose.msra.mxu0 0
        %732 = vmatpush.bf16.xpose.msra.mxu0 0
        %733 = vmatpush.bf16.xpose.msra.mxu0 0
        %734 = vmatpush.bf16.xpose.msra.mxu0 0
        %735 = vmatpush.bf16.xpose.msra.mxu0 0
        %736 = vmatpush.bf16.xpose.msra.mxu0 0
        %737 = vmatpush.bf16.xpose.msra.mxu0 0
        %738 = vmatpush.bf16.xpose.msra.mxu0 %v729
        %739 = vmatmul.bf16.gmra.mxu0 %v726
        %v740 = vpop.f32.mrf.mxu0
        %v741 = vadd.f32 0.0, %v740
        %v742 = vpop.f32.mrf.mxu0
        %743 = vdwg.mxu0
        %744 = vxpose.xlu0.b32.start [1/16] %v684, 128
        %745 = vxpose.xlu0.b32.cont [2/16] %v703, 128
        %746 = vxpose.xlu0.b32.cont [3/16] %v722, 128
        %747 = vxpose.xlu0.b32.cont [4/16] %v741, 128
        %748 = vxpose.xlu0.b32.cont [5/16] 0.0, 128
        %749 = vxpose.xlu0.b32.cont [6/16] 0.0, 128
        %750 = vxpose.xlu0.b32.cont [7/16] 0.0, 128
        %751 = vxpose.xlu0.b32.cont [8/16] 0.0, 128
        %752 = vxpose.xlu0.b32.cont [9/16] 0.0, 128
        %753 = vxpose.xlu0.b32.cont [10/16] 0.0, 128
        %754 = vxpose.xlu0.b32.cont [11/16] 0.0, 128
        %755 = vxpose.xlu0.b32.cont [12/16] 0.0, 128
        %756 = vxpose.xlu0.b32.cont [13/16] 0.0, 128
        %757 = vxpose.xlu0.b32.cont [14/16] 0.0, 128
        %758 = vxpose.xlu0.b32.cont [15/16] 0.0, 128
        %759 = vxpose.xlu0.b32.end [16/16] 0.0, 128
        %v760 = vpop.trf.xlu0
        %v761 = vpop.trf.xlu0
        %v762 = vpop.trf.xlu0
        %v763 = vpop.trf.xlu0
        %v764 = vpop.trf.xlu0
        %v765 = vpop.trf.xlu0
        %v766 = vpop.trf.xlu0
        %v767 = vpop.trf.xlu0
        %v768 = vpop.trf.xlu0
        %v769 = vpop.trf.xlu0
        %v770 = vpop.trf.xlu0
        %v771 = vpop.trf.xlu0
        %v772 = vpop.trf.xlu0
        %v773 = vpop.trf.xlu0
        %v774 = vpop.trf.xlu0
        %v775 = vpop.trf.xlu0
        %v776 = vpack.c.bf16 %v760, %v760
        %v777 = vld [vmem:[%s3] sm:$0xf]
        %v778 = vld [vmem:[%s3 + $0x4] sm:$0xf]
        %v779 = vld [vmem:[%s3 + $0x8] sm:$0xf]
        %v780 = vld [vmem:[%s3 + $0xc] sm:$0xf]
        %v781 = vld [vmem:[%s4] sm:$0x1]
        %v783 = vperm.slane %v781, 0
        %v789 = vunpack.c.l.b16 %v777
        %v790 = vunpack.c.l.b16 %v778
        %v791 = vunpack.c.l.b16 %v779
        %v792 = vunpack.c.l.b16 %v780
        %v793 = vpack.c.b16 %v790, %v789
        %v794 = vpack.c.b16 %v792, %v791
        %v798 = vsel %vm344, %v776, 0
        %800 = vmatpush.bf16.msra.mxu0 0
        %801 = vmatpush.bf16.msra.mxu0 0
        %802 = vmatpush.bf16.msra.mxu0 0
        %803 = vmatpush.bf16.msra.mxu0 0
        %804 = vmatpush.bf16.msra.mxu0 0
        %805 = vmatpush.bf16.msra.mxu0 0
        %806 = vmatpush.bf16.msra.mxu0 %v794
        %807 = vmatpush.bf16.msra.mxu0 %v793
        %808 = vmatmul.bf16.gmra.mxu0 %v798
        %v809 = vpop.f32.mrf.mxu0
        %v810 = vadd.f32 %v783, %v809
        %v811 = vpop.f32.mrf.mxu0
        %812 = vdwg.mxu0
        %813 = vst.msk [vmem:[%s217] sm:$0xff] %vm344, %v810
        %s814 = sand.u32 %s137, 1
        %s815 = scalar_lea.sflag [#allocation3], %s814
        %s816 = sand.u32 %s137, 1
        %s817 = smul.addr %s816, 8
        %s818 = scalar_lea.vmem [#allocation2], %s817
        // Predicated region
        $region41: #{tpu_custom_call.1} parent=39 // pred_check
          %p819 = pneg %p147
        $region42: #{tpu_custom_call.1} parent=39 // pred_check_branch
          %821 = sbr.rel (%p819) target = $region44
        $region43: #{tpu_custom_call.1} parent=39 // pred_region
          %823 = vsyncadd %s815, 0
          %s824 = smul.addr %s19, 8
          %s825 = scalar_lea.hbm %s5, %s824
          %s827 = sshll.u32 %s818, 4
          %s828 = int_to_ptr.vmem [resolvable:$true] %s827
          %s829 = sshll.u32 %s825, 4
          %s830 = int_to_ptr.hbm [resolvable:$true] %s829
          %832 = dma.vmem_to_hbm [thread:$0]  %s828, 128, %s830, %s815
        $region44: #{tpu_custom_call.1} parent=39 // pred_fallthru
          _
      $region40: #{tpu_custom_call.1} parent=5 // pred_fallthru
        _
      %p833 = scmp.le.s32.totalorder 2, %s14
      // Predicated region
      $region45: #{tpu_custom_call.1} parent=5 // pred_check
        %p834 = pneg %p833
      $region46: #{tpu_custom_call.1} parent=5 // pred_check_branch
        %836 = sbr.rel (%p834) target = $region48
      $region47: #{tpu_custom_call.1} parent=5 // pred_region
        %s837 = ssub.s32 %s14, 2
        // Predicated region
        $region49: #{tpu_custom_call.1} parent=47 // pred_check
          %p838 = pneg %p153
        $region50: #{tpu_custom_call.1} parent=47 // pred_check_branch
          %840 = sbr.rel (%p838) target = $region52
        $region51: #{tpu_custom_call.1} parent=47 // pred_region
          %s841 = sand.u32 %s138, 1
          %s842 = scalar_lea.sflag [#allocation3], %s841
          %s843 = sand.u32 %s138, 1
          %s844 = smul.addr %s843, 8
          %s845 = scalar_lea.vmem [#allocation2], %s844
          %847 = dma.done %s842, 128
        $region52: #{tpu_custom_call.1} parent=47 // pred_fallthru
          _
      $region48: #{tpu_custom_call.1} parent=5 // pred_fallthru
        _
    $region6: #{tpu_custom_call.1} parent=1 // loop_footer
      %s18 = sadd.s32 1, %s14
    $region7: #{tpu_custom_call.1} parent=1 // loop_footer_branch
      %13 = sbr.rel target = $region3
    $region8: #{tpu_custom_call.1} parent=1 // loop_exit
      _
    %848 = vsyncpa [#allocation3], 1
    %s849 = scalar_lea.sflag [#allocation3], 1
    %850 = vsyncpa %s849, 1

</llo_original>
